<compile_context>
chip_gen: v7x
topology: tpu7x:2x2x1
jax: 0.10.0
libtpu: 0.0.40
codegen_flags: <defaults>
</compile_context>

<pallas_src>
import functools

import jax
import jax.numpy as jnp
from jax import lax
from jax.experimental import pallas as pl
from jax.experimental.pallas import tpu as pltpu

LN_EPS = 1e-5  # torch.nn.LayerNorm default eps


def _hash_u32(h):
    """lowbias32 finalizer: cheap, well-mixed 32-bit hash (pure VPU integer ops)."""
    h = h ^ (h >> 16)
    h = h * jnp.uint32(0x7FEB352D)
    h = h ^ (h >> 15)
    h = h * jnp.uint32(0x846CA68B)
    h = h ^ (h >> 16)
    return h


def _layer_process_kernel(seed_ref, inp_ref, gamma_ref, beta_ref, out_ref,
                          *, process_sequence, dropout_rate, tile_rows, hidden):
    x = inp_ref[...].astype(jnp.float32)
    resid = x  # `inp` in the PyTorch module (original, un-processed input of this block)

    for op in process_sequence:  # static Python loop -> fully unrolled at trace time
        if op == 'a':
            x = x + resid
        elif op == 'd':
            # TODO(synk): RNG stream differs from torch.nn.Dropout (semantics match:
            # drop w.p. p, scale kept values by 1/(1-p)).
            seed_u = seed_ref[0].astype(jnp.uint32)
            row = (lax.broadcasted_iota(jnp.int32, x.shape, 0)
                   + pl.program_id(0) * tile_rows).astype(jnp.uint32)
            col = lax.broadcasted_iota(jnp.int32, x.shape, 1).astype(jnp.uint32)
            ctr = seed_u + (row * jnp.uint32(hidden) + col) * jnp.uint32(2654435761)
            bits = _hash_u32(ctr)
            # integer threshold compare + single select: no shift/float-convert/extra mul
            thr = jnp.uint32(min(int(round(dropout_rate * 4294967296.0)), 0xFFFFFFFF))
            keep = bits >= thr
            scale = jnp.float32(1.0 / (1.0 - dropout_rate))
            x = jnp.where(keep, x * scale, jnp.float32(0.0))
        elif op == 'n':
            mean = jnp.mean(x, axis=-1, keepdims=True)
            c = x - mean
            var = jnp.mean(c * c, axis=-1, keepdims=True)
            x = c * lax.rsqrt(var + LN_EPS)
            x = x * gamma_ref[...].astype(jnp.float32) + beta_ref[...].astype(jnp.float32)

    out_ref[...] = x.astype(out_ref.dtype)


def _choose_tile_rows(rows, hidden, *, pipeline_budget_bytes=24 << 20, max_tile_rows=1024):
    """Pick the largest row tile whose 2x(in)+2x(out) f32 double-buffers fit the budget.

    24 MiB budget stays under the 32 MiB scoped-VMEM limit we request below, which is safe
    on every generation (v5e/v6e: 128 MiB physical, v7x: 64 MiB physical per TC).
    """
    bytes_per_row_pipelined = 4 * hidden * 4  # 4 pipelined buffers, f32
    cap = max(8, pipeline_budget_bytes // bytes_per_row_pipelined)
    rows_ceil8 = -(-rows // 8) * 8
    tile = min(cap, max_tile_rows, rows_ceil8)
    tile = max(8, (tile // 8) * 8)  # sublane multiple
    return int(tile)


def layer_process(inp2d, gamma, beta, seed, *, process_sequence,
                  dropout_rate=0.1, tile_rows=None):
    """inp2d: (rows, hidden) float32. gamma/beta: (hidden,). seed: (1,) int32."""
    rows, hidden = inp2d.shape
    process_sequence = process_sequence.lower()
    if 'd' in process_sequence:
        assert 0.0 <= dropout_rate < 1.0, "dropout_rate must be in [0, 1)"

    if tile_rows is None:
        tile_rows = _choose_tile_rows(rows, hidden)

    # Remainder handling: pad rows up to a multiple of tile_rows, slice afterwards.
    rows_p = -(-rows // tile_rows) * tile_rows
    x = inp2d if rows_p == rows else jnp.pad(inp2d, ((0, rows_p - rows), (0, 0)))

    # NOTE: real model hiddens (768/1024/4096...) are lane-dense (multiple of 128); for
    # tiny hiddens (< 128, as in the demo) the block equals the full array, which is
    # allowed but lowers to masked stores. Pad/pack in a wrapper if that ever matters.
    kernel = functools.partial(
        _layer_process_kernel,
        process_sequence=process_sequence,
        dropout_rate=float(dropout_rate),
        tile_rows=tile_rows,
        hidden=hidden,
    )
    out = pl.pallas_call(
        kernel,
        out_shape=jax.ShapeDtypeStruct((rows_p, hidden), inp2d.dtype),
        grid_spec=pltpu.PrefetchScalarGridSpec(
            num_scalar_prefetch=1,  # seed lands in SMEM
            grid=(rows_p // tile_rows,),
            in_specs=[
                pl.BlockSpec((tile_rows, hidden), lambda i, seed: (i, 0)),
                pl.BlockSpec((1, hidden), lambda i, seed: (0, 0)),  # gamma (resident)
                pl.BlockSpec((1, hidden), lambda i, seed: (0, 0)),  # beta  (resident)
            ],
            out_specs=pl.BlockSpec((tile_rows, hidden), lambda i, seed: (i, 0)),
        ),
        compiler_params=pltpu.CompilerParams(
            # stateless hash RNG -> every grid step independent -> megacore-shardable
            dimension_semantics=("parallel",),
            vmem_limit_bytes=32 << 20,
        ),
    )(seed, x, gamma.reshape(1, hidden), beta.reshape(1, hidden))

    if rows_p != rows:
        out = out[:rows]
    return out


if __name__ == "__main__":
    key = jax.random.PRNGKey(0)
    k_x, k_g, k_b = jax.random.split(key, 3)

    batch, seq, hidden = 2, 8, 32
    x = jax.random.normal(k_x, (batch, seq, hidden), dtype=jnp.float32)
    # deterministic "LayerNorm" parameters (perturbed away from ones/zeros so they matter)
    gamma = 1.0 + 0.1 * jax.random.normal(k_g, (hidden,), dtype=jnp.float32)
    beta = 0.1 * jax.random.normal(k_b, (hidden,), dtype=jnp.float32)
    seed = jnp.array([1234], dtype=jnp.int32)

    x2d = x.reshape(batch * seq, hidden)

    # Deterministic correctness check: process_sequence="an" (residual add + layernorm)
    out_an = layer_process(x2d, gamma, beta, seed, process_sequence="an")

    def ref_an(xx):
        y = xx + xx
        m = y.mean(-1, keepdims=True)
        v = ((y - m) ** 2).mean(-1, keepdims=True)
        return (y - m) / jnp.sqrt(v + LN_EPS) * gamma + beta

    assert jnp.allclose(out_an, ref_an(x2d), atol=1e-5, rtol=1e-5), "mismatch vs reference"

    # Full sequence with dropout: "adn" (add -> dropout -> layernorm), training semantics
    out_adn = layer_process(x2d, gamma, beta, seed,
                            process_sequence="adn", dropout_rate=0.1)
    out_adn = out_adn.reshape(batch, seq, hidden)
    jax.block_until_ready(out_adn)
    assert bool(jnp.all(jnp.isfinite(out_adn))), "non-finite values in dropout path"
    print("KERNEL_OK")
</pallas_src>

<mosaic_0001>
module attributes {stable_mosaic.version = 11 : i64} {
  func.func @_layer_process_kernel(%arg0: i32, %arg1: memref<1xi32, #tpu.memory_space<smem>>, %arg2: memref<16x32xf32, #tpu.memory_space<vmem>>, %arg3: memref<1x32xf32, #tpu.memory_space<vmem>>, %arg4: memref<1x32xf32, #tpu.memory_space<vmem>>, %arg5: memref<16x32xf32, #tpu.memory_space<vmem>>) attributes {dimension_semantics = [#tpu.dimension_semantics<parallel>], iteration_bounds = array<i64: 1>, scalar_prefetch = 1 : i64, scratch_operands = 0 : i64, tpu.core_type = #tpu.core_type<tc>, window_params = [{transform_indices = @transform_0, window_bounds = array<i64: 16, 32>}, {pipeline_mode = #tpu.pipeline_mode<synchronous>, transform_indices = @transform_1, window_bounds = array<i64: 1, 32>}, {pipeline_mode = #tpu.pipeline_mode<synchronous>, transform_indices = @transform_2, window_bounds = array<i64: 1, 32>}, {transform_indices = @transform_3, window_bounds = array<i64: 16, 32>}]} {
    %c0 = arith.constant 0 : index
    %c0_0 = arith.constant 0 : index
    %0 = vector.load %arg2[%c0, %c0_0] : memref<16x32xf32, #tpu.memory_space<vmem>>, vector<16x32xf32>
    %1 = arith.addf %0, %0 : vector<16x32xf32>
    %cst = arith.constant dense<0.000000e+00> : vector<16xf32>
    %2 = vector.multi_reduction <add>, %1, %cst [1] : vector<16x32xf32> to vector<16xf32>
    %3 = vector.shape_cast %2 : vector<16xf32> to vector<16x1xf32>
    %cst_1 = arith.constant 3.200000e+01 : f32
    %4 = vector.broadcast %cst_1 : f32 to vector<16x1xf32>
    %5 = arith.divf %3, %4 : vector<16x1xf32>
    %6 = vector.broadcast %5 : vector<16x1xf32> to vector<16x32xf32>
    %7 = arith.subf %1, %6 : vector<16x32xf32>
    %8 = arith.mulf %7, %7 : vector<16x32xf32>
    %cst_2 = arith.constant dense<0.000000e+00> : vector<16xf32>
    %9 = vector.multi_reduction <add>, %8, %cst_2 [1] : vector<16x32xf32> to vector<16xf32>
    %10 = vector.shape_cast %9 : vector<16xf32> to vector<16x1xf32>
    %cst_3 = arith.constant 3.200000e+01 : f32
    %11 = vector.broadcast %cst_3 : f32 to vector<16x1xf32>
    %12 = arith.divf %10, %11 : vector<16x1xf32>
    %cst_4 = arith.constant 9.99999974E-6 : f32
    %13 = vector.broadcast %cst_4 : f32 to vector<16x1xf32>
    %14 = arith.addf %12, %13 : vector<16x1xf32>
    %15 = math.rsqrt %14 : vector<16x1xf32>
    %16 = vector.broadcast %15 : vector<16x1xf32> to vector<16x32xf32>
    %17 = arith.mulf %7, %16 : vector<16x32xf32>
    %c0_5 = arith.constant 0 : index
    %c0_6 = arith.constant 0 : index
    %18 = vector.load %arg3[%c0_5, %c0_6] : memref<1x32xf32, #tpu.memory_space<vmem>>, vector<1x32xf32>
    %19 = vector.broadcast %18 : vector<1x32xf32> to vector<16x32xf32>
    %20 = arith.mulf %17, %19 : vector<16x32xf32>
    %c0_7 = arith.constant 0 : index
    %c0_8 = arith.constant 0 : index
    %21 = vector.load %arg4[%c0_7, %c0_8] : memref<1x32xf32, #tpu.memory_space<vmem>>, vector<1x32xf32>
    %22 = vector.broadcast %21 : vector<1x32xf32> to vector<16x32xf32>
    %23 = arith.addf %20, %22 : vector<16x32xf32>
    %c0_9 = arith.constant 0 : index
    %c0_10 = arith.constant 0 : index
    %24 = vector.load %arg5[%c0_9, %c0_10] : memref<16x32xf32, #tpu.memory_space<vmem>>, vector<16x32xf32>
    tpu.vector_store %arg5[%c0_9, %c0_10], %23 {strides = array<i32>} : memref<16x32xf32, #tpu.memory_space<vmem>>, vector<16x32xf32>,
    return
  }
  func.func @transform_0(%arg0: i32, %arg1: memref<1xi32, #tpu.memory_space<smem>>) -> (i32, i32) {
    %c0_i32 = arith.constant 0 : i32
    %c0_i32_0 = arith.constant 0 : i32
    return %arg0, %c0_i32 : i32, i32
  }
  func.func @transform_1(%arg0: i32, %arg1: memref<1xi32, #tpu.memory_space<smem>>) -> (i32, i32) {
    %c0_i32 = arith.constant 0 : i32
    %c0_i32_0 = arith.constant 0 : i32
    %c0_i32_1 = arith.constant 0 : i32
    return %c0_i32, %c0_i32_0 : i32, i32
  }
  func.func @transform_2(%arg0: i32, %arg1: memref<1xi32, #tpu.memory_space<smem>>) -> (i32, i32) {
    %c0_i32 = arith.constant 0 : i32
    %c0_i32_0 = arith.constant 0 : i32
    %c0_i32_1 = arith.constant 0 : i32
    return %c0_i32, %c0_i32_0 : i32, i32
  }
  func.func @transform_3(%arg0: i32, %arg1: memref<1xi32, #tpu.memory_space<smem>>) -> (i32, i32) {
    %c0_i32 = arith.constant 0 : i32
    %c0_i32_0 = arith.constant 0 : i32
    return %arg0, %c0_i32 : i32, i32
  }
}

</mosaic_0001>

<llo_original>
// kernel: tpu_custom_call.1
$region0: #{tpu_custom_call.1}
  #allocation0 [shape = 'u32[]', space=smem, size = 0x4, offset = 0x4, fixed_abs, tag = 'smem constant byte address 0x4 - core index']
  #allocation1 [shape = 'u32[144,128]{1,0:T(1,128)}', space=vmem, size = 0x12000, scoped, tag = 'internal scratch']
  #allocation2 [shape = 's32[1]{0}', space=sflag, size = 0x4, scoped, tag = 'scoped memory for tpu_custom_call.1']
  #allocation3 [shape = 's32[1]{0:T(128)S(6)}', space=smem, size = 0x200, scoped, tag = 'prefetched SMEM operand 0']
  %s0 = inlined_call_operand.<no memory space> [shape: s32[1], index: 0, kind: input, shape index: {}]
  %s1 = inlined_call_operand.hbm [shape: f32[16,32], index: 1, kind: input, shape index: {}]
  %s2 = inlined_call_operand.vmem [shape: f32[1,32], index: 2, kind: input, shape index: {}]
  %s3 = inlined_call_operand.vmem [shape: f32[1,32], index: 3, kind: input, shape index: {}]
  %s4 = inlined_call_operand.hbm [shape: f32[16,32], index: 4, kind: output, shape index: {}]
  %s5 = sld [smem:[#allocation0]]
  $region26: #{tpu_custom_call.1} parent=0
    _
  %s7 = ssub.s32 1, %s5
  %s8 = scalar_select 0, %s7, %s5
  %9 = sst [smem:[#allocation3]] %s0
  $region1: #{tpu_custom_call.1} parent=0
    #allocation4 [shape = 'u8[8192]{0}', space=vmem, size = 0x2000, scoped, tag = 'input window, operand 1, single buffered']
    #allocation5 [shape = 's32[1]{0}', space=sflag, size = 0x4, scoped, tag = 'scoped memory for tpu_custom_call.1']
    #allocation6 [shape = 's32[1]{0}', space=sflag, size = 0x4, scoped, tag = 'scoped memory for tpu_custom_call.1']
    #allocation7 [shape = 'u8[8192]{0}', space=vmem, size = 0x2000, scoped, tag = 'output window, operand 0, single buffered']
    %10 = vsyncpa [#allocation5], 0
    %11 = vsyncpa [#allocation6], 0
    // Predicated region
    $region2: #{tpu_custom_call.1} parent=1 // pred_check
      _
    $region3: #{tpu_custom_call.1} parent=1 // pred_check_branch
      %13 = sbr.rel (0) target = $region5
    $region4: #{tpu_custom_call.1} parent=1 // pred_region
      %s15 = ssub.s32 256, 256
      %16 = vsyncadd [#allocation5], %s15
      %s17 = sshll.u32 [#allocation4], 4
      %s18 = int_to_ptr.vmem [resolvable:$true] %s17
      %23 = dma.hbm_to_vmem [thread:$0]  %s1, 256, %s18, [#allocation5], 128, 128, 8
    $region5: #{tpu_custom_call.1} parent=1 // pred_fallthru
      _
    // Predicated region
    $region6: #{tpu_custom_call.1} parent=1 // pred_check
      _
    $region7: #{tpu_custom_call.1} parent=1 // pred_check_branch
      %25 = sbr.rel (0) target = $region9
    $region8: #{tpu_custom_call.1} parent=1 // pred_region
      _
    $region9: #{tpu_custom_call.1} parent=1 // pred_fallthru
      _
    // Predicated region
    $region10: #{tpu_custom_call.1} parent=1 // pred_check
      _
    $region11: #{tpu_custom_call.1} parent=1 // pred_check_branch
      %27 = sbr.rel (0) target = $region13
    $region12: #{tpu_custom_call.1} parent=1 // pred_region
      _
    $region13: #{tpu_custom_call.1} parent=1 // pred_fallthru
      _
    // Predicated region
    $region14: #{tpu_custom_call.1} parent=1 // pred_check
      _
    $region15: #{tpu_custom_call.1} parent=1 // pred_check_branch
      %29 = sbr.rel (0) target = $region17
    $region16: #{tpu_custom_call.1} parent=1 // pred_region
      %30 = dma.done [#allocation5], 256
    $region17: #{tpu_custom_call.1} parent=1 // pred_fallthru
      _
    %v31 = vld [vmem:[#allocation4] sm:$0xff]
    %v32 = vld [vmem:[#allocation4 + $0x8] sm:$0xff]
    %v33 = vadd.f32 %v31, %v31
    %v34 = vadd.f32 %v32, %v32
    %vm35 = vcmask 261120
    %v36 = vsel %vm35, %v33, 0.0
    %37 = vadd.xlane.f32.xlu0 %v36
    %v38 = vpop.xlane.xlu0 %37
    %v39 = vsel %vm35, %v34, 0.0
    %40 = vadd.xlane.f32.xlu0 %v39
    %v41 = vpop.xlane.xlu0 %40
    %v42 = vrcp.pop 32.0
    %v43 = vmul.f32 %v38, %v42
    %v44 = vmul.f32 %v41, %v42
    %v45 = vsub.f32 %v33, %v43
    %v46 = vsub.f32 %v34, %v44
    %v47 = vmul.f32 %v45, %v45
    %v48 = vmul.f32 %v46, %v46
    %v49 = vsel %vm35, %v47, 0.0
    %50 = vadd.xlane.f32.xlu0 %v49
    %v51 = vpop.xlane.xlu0 %50
    %v52 = vsel %vm35, %v48, 0.0
    %53 = vadd.xlane.f32.xlu0 %v52
    %v54 = vpop.xlane.xlu0 %53
    %v55 = vmul.f32 %v51, %v42
    %v56 = vmul.f32 %v54, %v42
    %v57 = vadd.f32 %v55, 1e-05
    %v58 = vadd.f32 %v56, 1e-05
    %v59 = vrsqrt.pop %v57
    %v60 = vrsqrt.pop %v58
    %v61 = vmul.f32 %v45, %v59
    %v62 = vmul.f32 %v46, %v60
    %v63 = vld [vmem:[%s2] sm:$0x1]
    %v65 = vlaneseq
    %v66 = vshrl.u32 %v65, 7
    %v67 = vsub.s32 0, %v66
    %v68 = vrot.slane %v63, %v67
    %v70 = vmul.f32 %v61, %v68
    %v71 = vmul.f32 %v62, %v68
    %v72 = vld [vmem:[%s3] sm:$0x1]
    %v74 = vlaneseq
    %v75 = vshrl.u32 %v74, 7
    %v76 = vsub.s32 0, %v75
    %v77 = vrot.slane %v72, %v76
    %v79 = vadd.f32 %v70, %v77
    %v80 = vadd.f32 %v71, %v77
    %81 = vst.msk [vmem:[#allocation7] sm:$0xff] %vm35, %v79
    %82 = vst.msk [vmem:[#allocation7 + $0x8] sm:$0xff] %vm35, %v80
    // Predicated region
    $region18: #{tpu_custom_call.1} parent=1 // pred_check
      _
    $region19: #{tpu_custom_call.1} parent=1 // pred_check_branch
      %84 = sbr.rel (0) target = $region21
    $region20: #{tpu_custom_call.1} parent=1 // pred_region
      %s86 = ssub.s32 256, 256
      %87 = vsyncadd [#allocation6], %s86
      %s88 = sshll.u32 [#allocation7], 4
      %s89 = int_to_ptr.vmem [resolvable:$true] %s88
      %94 = dma.vmem_to_hbm [thread:$0]  %s89, 256, %s4, [#allocation6], 128, 128, 8
    $region21: #{tpu_custom_call.1} parent=1 // pred_fallthru
      _
    // Predicated region
    $region22: #{tpu_custom_call.1} parent=1 // pred_check
      _
    $region23: #{tpu_custom_call.1} parent=1 // pred_check_branch
      %96 = sbr.rel (0) target = $region25
    $region24: #{tpu_custom_call.1} parent=1 // pred_region
      %97 = dma.done [#allocation6], 256
    $region25: #{tpu_custom_call.1} parent=1 // pred_fallthru
      _
    %98 = vsyncpa [#allocation5], 1
    %99 = vsyncpa [#allocation6], 1

</llo_original>
